<compile_context>
chip_gen: v7x
topology: tpu7x:2x2x1
jax: 0.10.0
libtpu: 0.0.40
codegen_flags: <defaults>
</compile_context>

<pallas_src>
import functools
import math

import jax
import jax.numpy as jnp
from jax import lax
from jax.experimental import pallas as pl
from jax.experimental.pallas import tpu as pltpu


def _round_up(x, m):
    return (x + m - 1) // m * m


def _vmem_capacity_bytes():
    try:
        return int(pltpu.get_tpu_info().vmem_capacity_bytes)
    except Exception:
        return 64 * 1024 * 1024          # v7x-safe fallback (smallest physical VMEM)


def _two_tensorcores():
    # v7x exposes 2 TensorCores per chip; keep >= 2 row tiles there.
    try:
        kind = jax.devices()[0].device_kind.lower()
        return ("v7" in kind) or ("7x" in kind)
    except Exception:
        return False


def _vmem_estimate(block, padded, d, fc_resident):
    """Rough upper bound on scoped VMEM: double-buffered operands + f32 temporaries."""
    fr = 2 * block * d * 2                                   # bf16 anchor tiles (2 buffers)
    fc = 2 * (padded if fc_resident else block) * d * 2      # bf16 contrast tiles
    lbl = 2 * (block * 4) * 2                                # label tiles
    out = 2 * block * 128 * 4                                # lane-dense output tile
    acc = 4 * block * 4                                      # m/d/p/c accumulators
    temps = 4 * block * block * 4                            # logits / exp / posf f32 temps
    return fr + fc + lbl + out + acc + temps


def _supcon_kernel(lbl_r_ref, lbl_c_ref, fr_ref, fc_ref, out_ref,
                   m_sc, d_sc, p_sc, c_sc, *,
                   block, pad_count, loss_scale, fc_resident):
    i = pl.program_id(0)          # anchor-row tile   ("parallel")
    k = pl.program_id(1)          # contrast-col tile ("arbitrary" reduction axis)

    @pl.when(k == 0)
    def _init():
        m_sc[...] = jnp.full_like(m_sc, -jnp.inf)   # running row max (incl. self, like torch)
        d_sc[...] = jnp.zeros_like(d_sc)            # running sum exp(logit - m), ALL columns
        p_sc[...] = jnp.zeros_like(p_sc)            # running sum mask * logit
        c_sc[...] = jnp.zeros_like(c_sc)            # running positive count

    f_row = fr_ref[...]                             # [T, D] bf16, pre-normalized * 1/sqrt(T)
    if fc_resident:
        off = pl.multiple_of(k * block, block)
        f_col = fc_ref[pl.ds(off, block), :]        # slice of the VMEM-resident contrast slab
    else:
        f_col = fc_ref[...]                         # [T, D] streamed contrast tile

    # bf16 MXU inputs, f32 accumulation; contract the feature dim directly (no transpose).
    # Both operands carry a 1/sqrt(T) factor, so logits == <f_i, f_j> / temperature.
    logits = lax.dot_general(
        f_row, f_col,
        dimension_numbers=(((1,), (1,)), ((), ())),
        preferred_element_type=jnp.float32)          # [T, T]

    # Positives straight from the label tiles; diagonal / padding handled by corrections.
    posf = (lbl_r_ref[...] == lbl_c_ref[...]).astype(jnp.float32)   # [T, T]

    # Online (flash) row-max / denominator over ALL columns.  Zero-padded contrast
    # columns produce logits == 0 exactly and can never beat the row max, because the
    # self logit (a sum of squares) is >= 0 and torch's row max includes the diagonal.
    m_prev = m_sc[...]
    m_new = jnp.maximum(m_prev, jnp.max(logits, axis=-1, keepdims=True))
    alpha = jnp.exp(m_prev - m_new)
    d_sc[...] = alpha * d_sc[...] + jnp.sum(jnp.exp(logits - m_new), axis=-1, keepdims=True)
    m_sc[...] = m_new

    p_sc[...] = p_sc[...] + jnp.sum(posf * logits, axis=-1, keepdims=True)
    c_sc[...] = c_sc[...] + jnp.sum(posf, axis=-1, keepdims=True)

    # The self-contrast term only exists on the diagonal tile: remove its exact
    # contribution there, instead of building iota/not-self masks on every step.
    @pl.when(i == k)
    def _remove_self():
        rr = lax.broadcasted_iota(jnp.int32, (block, block), 0)
        cc = lax.broadcasted_iota(jnp.int32, (block, block), 1)
        diag = jnp.sum(jnp.where(rr == cc, logits, 0.0),
                       axis=-1, keepdims=True)                  # l_ii from the same MXU pass
        d_sc[...] = d_sc[...] - jnp.exp(diag - m_new)
        p_sc[...] = p_sc[...] - diag
        c_sc[...] = c_sc[...] - 1.0

    @pl.when(k == pl.num_programs(1) - 1)
    def _finalize():
        m = m_sc[...]
        d = d_sc[...]
        if pad_count:
            # Each zero-padded contrast column contributed exactly exp(0 - m).
            d = d - jnp.float32(pad_count) * jnp.exp(-m)
        # sum(mask * log_prob) / sum(mask) = p / c - (m + log(d)).  Exact divide: the
        # finalize only touches T values per row tile.  Rows with zero positives give
        # NaN (0/0), matching the torch reference.  Padded anchor rows are sliced off
        # in the wrapper.
        mlpp = p_sc[...] / c_sc[...] - (m + jnp.log(d))
        # Lane-dense (unmasked) store: broadcast the [T, 1] loss across 128 lanes.
        out_ref[...] = jnp.broadcast_to(jnp.float32(loss_scale) * mlpp, out_ref.shape)


def supcon_loss(features, labels=None, mask=None, temperature=0.1,
                base_temperature=0.07, block_size=None, contrast_resident=None):
    """Matches SupConLoss(temperature, 'all', base_temperature).forward (n_views == 1)."""
    if labels is not None and mask is not None:
        raise ValueError("Cannot define both `labels` and `mask`")
    if mask is not None:
        # TODO(synk): explicit (possibly asymmetric) dense [B,B] mask input would need a
        # third tiled [B,B] operand; labels / SimCLR only.
        raise NotImplementedError("explicit `mask` is not supported; pass `labels`")

    B = features.shape[0]
    if labels is None:
        # SimCLR degenerate case (mask = eye): unique labels reproduce the torch behaviour
        # (zero positives after self-contrast removal -> NaN, exactly like the reference).
        labels = jnp.arange(B, dtype=jnp.int32)
    labels = jnp.asarray(labels).reshape(-1).astype(jnp.int32)
    if labels.shape[0] != B:
        raise ValueError("Num of labels does not match num of features")

    # torch: F.normalize(p=2, dim=-1, eps=1e-12) over the ORIGINAL last dim, then flatten
    # to [B, -1].  Pre-normalize once here (f32), fold 1/sqrt(temperature) into the single
    # shared operand (so the MXU product carries 1/temperature) and store bf16 in HBM.
    # TODO(synk): n_views > 1 (stacked anchors / repeated mask) is not implemented.
    f = features.astype(jnp.float32)
    nrm = jnp.sqrt(jnp.sum(f * f, axis=-1, keepdims=True))
    f = f / jnp.maximum(nrm, 1e-12)
    feat2d = f.reshape(B, -1)
    D = feat2d.shape[1]
    feat2d = (feat2d * (1.0 / math.sqrt(float(temperature)))).astype(jnp.bfloat16)

    cap = _vmem_capacity_bytes()
    budget = int(cap * 0.7)           # headroom for compiler scratch / pipeline overhead

    if block_size is None:
        # Prefer a single tile for small batches; otherwise the largest 128-aligned tile
        # that fits the per-generation VMEM budget (bigger tiles -> fewer contrast-stream
        # re-reads and less per-step pipeline overhead; 128 MiB parts can afford 1024).
        single = _round_up(B, 8)
        if single <= 1024 and _vmem_estimate(single, single, D, False) <= budget:
            block_size = single
        else:
            block_size = 128
            for cand in (1024, 512, 256):
                if _vmem_estimate(cand, _round_up(B, cand), D, False) <= budget:
                    block_size = cand
                    break
        # v7x: keep >= 2 row tiles so the "parallel" axis feeds both TensorCores.
        if _two_tensorcores() and B > 128:
            half = max(128, _round_up((B + 1) // 2, 128))
            if half < block_size:
                block_size = half
    block_size = max(8, _round_up(int(block_size), 8))
    padded = _round_up(B, block_size)
    if padded > block_size:
        block_size = _round_up(block_size, 128)   # multi-tile lane blocks must be 128-aligned
        padded = _round_up(B, block_size)

    pad = padded - B
    if pad:
        feat2d = jnp.pad(feat2d, ((0, pad), (0, 0)))
        labels = jnp.pad(labels, (0, pad), constant_values=-1)

    grid = (padded // block_size, padded // block_size)

    # Make the contrast features fully VMEM-resident when they fit: the k loop then does
    # no repeated HBM reads of the dominant stream.
    if contrast_resident is None:
        fc_resident = grid[1] > 1 and _vmem_estimate(block_size, padded, D, True) <= budget
    else:
        fc_resident = bool(contrast_resident) and grid[1] > 1

    vmem_limit = max(32 << 20,
                     min(int(cap * 0.9),
                         2 * _vmem_estimate(block_size, padded, D, fc_resident) + (8 << 20)))

    labels_row = labels.reshape(padded, 1)
    labels_col = labels.reshape(1, padded)

    kernel = functools.partial(
        _supcon_kernel,
        block=block_size,
        pad_count=pad,
        loss_scale=-(float(temperature) / float(base_temperature)),
        fc_resident=fc_resident)

    if fc_resident:
        fc_spec = pl.BlockSpec((padded, D), lambda i, k: (0, 0))        # resident slab
    else:
        fc_spec = pl.BlockSpec((block_size, D), lambda i, k: (k, 0))    # streamed tiles
        # TODO(synk): if a v7x profile shows exposed DMA here, sweep
        # pipeline_mode=pl.Buffered(3) on this spec.

    cost = pl.CostEstimate(
        flops=2 * padded * padded * D + 8 * padded * padded,
        transcendentals=padded * padded + 4 * padded,
        bytes_accessed=(padded * D * 2                                   # anchor stream
                        + padded * D * 2 * (1 if fc_resident else grid[0])  # contrast stream
                        + (1 + grid[0]) * padded * 4 * 2                 # labels
                        + padded * 128 * 4))                             # output

    out = pl.pallas_call(
        kernel,
        out_shape=jax.ShapeDtypeStruct((padded, 128), jnp.float32),
        grid_spec=pltpu.PrefetchScalarGridSpec(
            num_scalar_prefetch=0,
            grid=grid,
            in_specs=[
                pl.BlockSpec((block_size, 1), lambda i, k: (i, 0)),      # anchor labels
                pl.BlockSpec((1, block_size), lambda i, k: (0, k)),      # contrast labels
                pl.BlockSpec((block_size, D), lambda i, k: (i, 0)),      # anchor features
                fc_spec,                                                 # contrast features
            ],
            out_specs=pl.BlockSpec((block_size, 128), lambda i, k: (i, 0)),
            scratch_shapes=[pltpu.VMEM((block_size, 1), jnp.float32)] * 4,
        ),
        compiler_params=pltpu.CompilerParams(
            dimension_semantics=("parallel", "arbitrary"),
            vmem_limit_bytes=int(vmem_limit)),
        cost_estimate=cost,
    )(labels_row, labels_col, feat2d, feat2d)

    # loss.view(anchor_count, batch_size).mean() with anchor_count == 1
    return jnp.mean(out[:B, 0])


def _supcon_loss_ref(features, labels, temperature=0.1, base_temperature=0.07):
    """Pure-JAX f32 reference mirroring the PyTorch forward (for verification)."""
    B = features.shape[0]
    f = features.astype(jnp.float32)
    f = f / jnp.maximum(jnp.sqrt(jnp.sum(f * f, -1, keepdims=True)), 1e-12)
    f = f.reshape(B, -1)
    mask = (labels.reshape(-1, 1) == labels.reshape(1, -1)).astype(jnp.float32)
    logits = jnp.dot(f, f.T) / temperature
    logits = logits - jnp.max(logits, axis=1, keepdims=True)
    logits_mask = 1.0 - jnp.eye(B, dtype=jnp.float32)
    mask = mask * logits_mask
    exp_logits = jnp.exp(logits) * logits_mask
    log_prob = logits - jnp.log(jnp.sum(exp_logits, 1, keepdims=True))
    mlpp = jnp.sum(mask * log_prob, 1) / jnp.sum(mask, 1)
    return jnp.mean(-(temperature / base_temperature) * mlpp)


if __name__ == "__main__":
    key = jax.random.PRNGKey(0)
    k1, k2 = jax.random.split(key)

    # 1) Small single-tile case (grid (1, 1)).
    B, D = 8, 32
    features = jax.random.normal(k1, (B, D), dtype=jnp.float32)
    labels = jnp.array([0, 0, 1, 1, 2, 2, 3, 3], dtype=jnp.int32)

    loss = jax.block_until_ready(supcon_loss(features, labels=labels))
    ref = jax.block_until_ready(_supcon_loss_ref(features, labels))
    assert jnp.isfinite(loss), loss
    # bf16 MXU inputs (f32 accumulation) -> compare to the f32 reference with a few % tol.
    assert jnp.allclose(loss, ref, rtol=2e-2, atol=2e-2), (loss, ref)

    # 2) B=200: default heuristic (auto tile size + padding corrections).
    B2, D2 = 200, 32
    features2 = jax.random.normal(k2, (B2, D2), dtype=jnp.float32)
    labels2 = jnp.repeat(jnp.arange(B2 // 2, dtype=jnp.int32), 2)
    ref2 = jax.block_until_ready(_supcon_loss_ref(features2, labels2))

    loss2a = jax.block_until_ready(supcon_loss(features2, labels=labels2))
    assert jnp.isfinite(loss2a), loss2a
    assert jnp.allclose(loss2a, ref2, rtol=2e-2, atol=2e-2), (loss2a, ref2)

    # 3) Multi-tile (grid (2, 2), 128x128 tiles, padded to 256) with the VMEM-resident
    #    contrast slab (default when it fits).
    loss2b = jax.block_until_ready(supcon_loss(features2, labels=labels2, block_size=128))
    assert jnp.isfinite(loss2b), loss2b
    assert jnp.allclose(loss2b, ref2, rtol=2e-2, atol=2e-2), (loss2b, ref2)

    # 4) Same shapes but force the streamed (tiled, double-buffered) contrast path.
    loss2c = jax.block_until_ready(
        supcon_loss(features2, labels=labels2, block_size=128, contrast_resident=False))
    assert jnp.isfinite(loss2c), loss2c
    assert jnp.allclose(loss2c, ref2, rtol=2e-2, atol=2e-2), (loss2c, ref2)

    print("KERNEL_OK")
</pallas_src>

<mosaic_0001>
module attributes {stable_mosaic.version = 11 : i64} {
  func.func @_supcon_kernel(%arg0: i32, %arg1: i32, %arg2: memref<8x1xi32, #tpu.memory_space<vmem>>, %arg3: memref<1x8xi32, #tpu.memory_space<vmem>>, %arg4: memref<8x32xbf16, #tpu.memory_space<vmem>>, %arg5: memref<8x32xbf16, #tpu.memory_space<vmem>>, %arg6: memref<8x128xf32, #tpu.memory_space<vmem>>, %arg7: memref<8x1xf32, #tpu.memory_space<vmem>>, %arg8: memref<8x1xf32, #tpu.memory_space<vmem>>, %arg9: memref<8x1xf32, #tpu.memory_space<vmem>>, %arg10: memref<8x1xf32, #tpu.memory_space<vmem>>) attributes {dimension_semantics = [#tpu.dimension_semantics<parallel>, #tpu.dimension_semantics<arbitrary>], iteration_bounds = array<i64: 1, 1>, scalar_prefetch = 0 : i64, scratch_operands = 4 : i64, tpu.core_type = #tpu.core_type<tc>, window_params = [{transform_indices = @transform_0, window_bounds = array<i64: 8, 1>}, {transform_indices = @transform_1, window_bounds = array<i64: 1, 8>}, {transform_indices = @transform_2, window_bounds = array<i64: 8, 32>}, {transform_indices = @transform_3, window_bounds = array<i64: 8, 32>}, {transform_indices = @transform_4, window_bounds = array<i64: 8, 128>}]} {
    %c0_i32 = arith.constant 0 : i32
    %0 = arith.cmpi eq, %arg1, %c0_i32 : i32
    %1 = arith.extui %0 : i1 to i32
    %c0_i32_0 = arith.constant 0 : i32
    %2 = arith.cmpi ne, %1, %c0_i32_0 : i32
    scf.if %2 {
      %cst_31 = arith.constant 0xFF800000 : f32
      %46 = vector.broadcast %cst_31 : f32 to vector<8x1xf32>
      %c0_32 = arith.constant 0 : index
      %c0_33 = arith.constant 0 : index
      %47 = vector.load %arg7[%c0_32, %c0_33] : memref<8x1xf32, #tpu.memory_space<vmem>>, vector<8x1xf32>
      tpu.vector_store %arg7[%c0_32, %c0_33], %46 {strides = array<i32>} : memref<8x1xf32, #tpu.memory_space<vmem>>, vector<8x1xf32>,
      %cst_34 = arith.constant 0.000000e+00 : f32
      %48 = vector.broadcast %cst_34 : f32 to vector<8x1xf32>
      %c0_35 = arith.constant 0 : index
      %c0_36 = arith.constant 0 : index
      %49 = vector.load %arg8[%c0_35, %c0_36] : memref<8x1xf32, #tpu.memory_space<vmem>>, vector<8x1xf32>
      tpu.vector_store %arg8[%c0_35, %c0_36], %48 {strides = array<i32>} : memref<8x1xf32, #tpu.memory_space<vmem>>, vector<8x1xf32>,
      %cst_37 = arith.constant 0.000000e+00 : f32
      %50 = vector.broadcast %cst_37 : f32 to vector<8x1xf32>
      %c0_38 = arith.constant 0 : index
      %c0_39 = arith.constant 0 : index
      %51 = vector.load %arg9[%c0_38, %c0_39] : memref<8x1xf32, #tpu.memory_space<vmem>>, vector<8x1xf32>
      tpu.vector_store %arg9[%c0_38, %c0_39], %50 {strides = array<i32>} : memref<8x1xf32, #tpu.memory_space<vmem>>, vector<8x1xf32>,
      %cst_40 = arith.constant 0.000000e+00 : f32
      %52 = vector.broadcast %cst_40 : f32 to vector<8x1xf32>
      %c0_41 = arith.constant 0 : index
      %c0_42 = arith.constant 0 : index
      %53 = vector.load %arg10[%c0_41, %c0_42] : memref<8x1xf32, #tpu.memory_space<vmem>>, vector<8x1xf32>
      tpu.vector_store %arg10[%c0_41, %c0_42], %52 {strides = array<i32>} : memref<8x1xf32, #tpu.memory_space<vmem>>, vector<8x1xf32>,
    } else {
    }
    %c0 = arith.constant 0 : index
    %c0_1 = arith.constant 0 : index
    %3 = vector.load %arg4[%c0, %c0_1] : memref<8x32xbf16, #tpu.memory_space<vmem>>, vector<8x32xbf16>
    %c0_2 = arith.constant 0 : index
    %c0_3 = arith.constant 0 : index
    %4 = vector.load %arg5[%c0_2, %c0_3] : memref<8x32xbf16, #tpu.memory_space<vmem>>, vector<8x32xbf16>
    %cst = arith.constant dense<0.000000e+00> : vector<8x8xf32>
    %5 = tpu.matmul %3, %4, %cst {dimension_numbers = #tpu.dot_dimension_numbers<[1], [1], [0], [0], [0, 0, 1, 0], [], []>} : vector<8x32xbf16>, vector<8x32xbf16>, vector<8x8xf32> -> vector<8x8xf32>
    %c0_4 = arith.constant 0 : index
    %c0_5 = arith.constant 0 : index
    %6 = vector.load %arg2[%c0_4, %c0_5] : memref<8x1xi32, #tpu.memory_space<vmem>>, vector<8x1xi32>
    %c0_6 = arith.constant 0 : index
    %c0_7 = arith.constant 0 : index
    %7 = vector.load %arg3[%c0_6, %c0_7] : memref<1x8xi32, #tpu.memory_space<vmem>>, vector<1x8xi32>
    %8 = vector.broadcast %6 : vector<8x1xi32> to vector<8x8xi32>
    %9 = vector.broadcast %7 : vector<1x8xi32> to vector<8x8xi32>
    %10 = arith.cmpi eq, %8, %9 : vector<8x8xi32>
    %11 = arith.extui %10 : vector<8x8xi1> to vector<8x8xi32>
    %12 = arith.sitofp %11 : vector<8x8xi32> to vector<8x8xf32>
    %c0_8 = arith.constant 0 : index
    %c0_9 = arith.constant 0 : index
    %13 = vector.load %arg7[%c0_8, %c0_9] : memref<8x1xf32, #tpu.memory_space<vmem>>, vector<8x1xf32>
    %cst_10 = arith.constant dense<0xFF800000> : vector<8xf32>
    %14 = vector.multi_reduction <maximumf>, %5, %cst_10 [1] : vector<8x8xf32> to vector<8xf32>
    %15 = vector.shape_cast %14 : vector<8xf32> to vector<8x1xf32>
    %16 = arith.maximumf %13, %15 : vector<8x1xf32>
    %17 = arith.subf %13, %16 : vector<8x1xf32>
    %18 = math.exp %17 : vector<8x1xf32>
    %c0_11 = arith.constant 0 : index
    %c0_12 = arith.constant 0 : index
    %19 = vector.load %arg8[%c0_11, %c0_12] : memref<8x1xf32, #tpu.memory_space<vmem>>, vector<8x1xf32>
    %20 = arith.mulf %18, %19 : vector<8x1xf32>
    %21 = vector.broadcast %16 : vector<8x1xf32> to vector<8x8xf32>
    %22 = arith.subf %5, %21 : vector<8x8xf32>
    %23 = math.exp %22 : vector<8x8xf32>
    %cst_13 = arith.constant dense<0.000000e+00> : vector<8xf32>
    %24 = vector.multi_reduction <add>, %23, %cst_13 [1] : vector<8x8xf32> to vector<8xf32>
    %25 = vector.shape_cast %24 : vector<8xf32> to vector<8x1xf32>
    %26 = arith.addf %20, %25 : vector<8x1xf32>
    %c0_14 = arith.constant 0 : index
    %c0_15 = arith.constant 0 : index
    %27 = vector.load %arg8[%c0_14, %c0_15] : memref<8x1xf32, #tpu.memory_space<vmem>>, vector<8x1xf32>
    tpu.vector_store %arg8[%c0_14, %c0_15], %26 {strides = array<i32>} : memref<8x1xf32, #tpu.memory_space<vmem>>, vector<8x1xf32>,
    %c0_16 = arith.constant 0 : index
    %c0_17 = arith.constant 0 : index
    %28 = vector.load %arg7[%c0_16, %c0_17] : memref<8x1xf32, #tpu.memory_space<vmem>>, vector<8x1xf32>
    tpu.vector_store %arg7[%c0_16, %c0_17], %16 {strides = array<i32>} : memref<8x1xf32, #tpu.memory_space<vmem>>, vector<8x1xf32>,
    %c0_18 = arith.constant 0 : index
    %c0_19 = arith.constant 0 : index
    %29 = vector.load %arg9[%c0_18, %c0_19] : memref<8x1xf32, #tpu.memory_space<vmem>>, vector<8x1xf32>
    %30 = arith.mulf %12, %5 : vector<8x8xf32>
    %cst_20 = arith.constant dense<0.000000e+00> : vector<8xf32>
    %31 = vector.multi_reduction <add>, %30, %cst_20 [1] : vector<8x8xf32> to vector<8xf32>
    %32 = vector.shape_cast %31 : vector<8xf32> to vector<8x1xf32>
    %33 = arith.addf %29, %32 : vector<8x1xf32>
    %c0_21 = arith.constant 0 : index
    %c0_22 = arith.constant 0 : index
    %34 = vector.load %arg9[%c0_21, %c0_22] : memref<8x1xf32, #tpu.memory_space<vmem>>, vector<8x1xf32>
    tpu.vector_store %arg9[%c0_21, %c0_22], %33 {strides = array<i32>} : memref<8x1xf32, #tpu.memory_space<vmem>>, vector<8x1xf32>,
    %c0_23 = arith.constant 0 : index
    %c0_24 = arith.constant 0 : index
    %35 = vector.load %arg10[%c0_23, %c0_24] : memref<8x1xf32, #tpu.memory_space<vmem>>, vector<8x1xf32>
    %cst_25 = arith.constant dense<0.000000e+00> : vector<8xf32>
    %36 = vector.multi_reduction <add>, %12, %cst_25 [1] : vector<8x8xf32> to vector<8xf32>
    %37 = vector.shape_cast %36 : vector<8xf32> to vector<8x1xf32>
    %38 = arith.addf %35, %37 : vector<8x1xf32>
    %c0_26 = arith.constant 0 : index
    %c0_27 = arith.constant 0 : index
    %39 = vector.load %arg10[%c0_26, %c0_27] : memref<8x1xf32, #tpu.memory_space<vmem>>, vector<8x1xf32>
    tpu.vector_store %arg10[%c0_26, %c0_27], %38 {strides = array<i32>} : memref<8x1xf32, #tpu.memory_space<vmem>>, vector<8x1xf32>,
    %40 = arith.cmpi eq, %arg0, %arg1 : i32
    %41 = arith.extui %40 : i1 to i32
    %c0_i32_28 = arith.constant 0 : i32
    %42 = arith.cmpi ne, %41, %c0_i32_28 : i32
    scf.if %42 {
      %46 = tpu.iota {dimensions = array<i32: 0>} : vector<8x8xi32>
      %47 = tpu.iota {dimensions = array<i32: 1>} : vector<8x8xi32>
      %48 = arith.cmpi eq, %46, %47 : vector<8x8xi32>
      %cst_31 = arith.constant 0.000000e+00 : f32
      %49 = vector.broadcast %cst_31 : f32 to vector<8x8xf32>
      %50 = arith.select %48, %5, %49 : vector<8x8xi1>, vector<8x8xf32>
      %cst_32 = arith.constant dense<0.000000e+00> : vector<8xf32>
      %51 = vector.multi_reduction <add>, %50, %cst_32 [1] : vector<8x8xf32> to vector<8xf32>
      %52 = vector.shape_cast %51 : vector<8xf32> to vector<8x1xf32>
      %c0_33 = arith.constant 0 : index
      %c0_34 = arith.constant 0 : index
      %53 = vector.load %arg8[%c0_33, %c0_34] : memref<8x1xf32, #tpu.memory_space<vmem>>, vector<8x1xf32>
      %54 = arith.subf %52, %16 : vector<8x1xf32>
      %55 = math.exp %54 : vector<8x1xf32>
      %56 = arith.subf %53, %55 : vector<8x1xf32>
      %c0_35 = arith.constant 0 : index
      %c0_36 = arith.constant 0 : index
      %57 = vector.load %arg8[%c0_35, %c0_36] : memref<8x1xf32, #tpu.memory_space<vmem>>, vector<8x1xf32>
      tpu.vector_store %arg8[%c0_35, %c0_36], %56 {strides = array<i32>} : memref<8x1xf32, #tpu.memory_space<vmem>>, vector<8x1xf32>,
      %c0_37 = arith.constant 0 : index
      %c0_38 = arith.constant 0 : index
      %58 = vector.load %arg9[%c0_37, %c0_38] : memref<8x1xf32, #tpu.memory_space<vmem>>, vector<8x1xf32>
      %59 = arith.subf %58, %52 : vector<8x1xf32>
      %c0_39 = arith.constant 0 : index
      %c0_40 = arith.constant 0 : index
      %60 = vector.load %arg9[%c0_39, %c0_40] : memref<8x1xf32, #tpu.memory_space<vmem>>, vector<8x1xf32>
      tpu.vector_store %arg9[%c0_39, %c0_40], %59 {strides = array<i32>} : memref<8x1xf32, #tpu.memory_space<vmem>>, vector<8x1xf32>,
      %c0_41 = arith.constant 0 : index
      %c0_42 = arith.constant 0 : index
      %61 = vector.load %arg10[%c0_41, %c0_42] : memref<8x1xf32, #tpu.memory_space<vmem>>, vector<8x1xf32>
      %cst_43 = arith.constant 1.000000e+00 : f32
      %62 = vector.broadcast %cst_43 : f32 to vector<8x1xf32>
      %63 = arith.subf %61, %62 : vector<8x1xf32>
      %c0_44 = arith.constant 0 : index
      %c0_45 = arith.constant 0 : index
      %64 = vector.load %arg10[%c0_44, %c0_45] : memref<8x1xf32, #tpu.memory_space<vmem>>, vector<8x1xf32>
      tpu.vector_store %arg10[%c0_44, %c0_45], %63 {strides = array<i32>} : memref<8x1xf32, #tpu.memory_space<vmem>>, vector<8x1xf32>,
    } else {
    }
    %c0_i32_29 = arith.constant 0 : i32
    %43 = arith.cmpi eq, %arg1, %c0_i32_29 : i32
    %44 = arith.extui %43 : i1 to i32
    %c0_i32_30 = arith.constant 0 : i32
    %45 = arith.cmpi ne, %44, %c0_i32_30 : i32
    scf.if %45 {
      %c0_31 = arith.constant 0 : index
      %c0_32 = arith.constant 0 : index
      %46 = vector.load %arg7[%c0_31, %c0_32] : memref<8x1xf32, #tpu.memory_space<vmem>>, vector<8x1xf32>
      %c0_33 = arith.constant 0 : index
      %c0_34 = arith.constant 0 : index
      %47 = vector.load %arg8[%c0_33, %c0_34] : memref<8x1xf32, #tpu.memory_space<vmem>>, vector<8x1xf32>
      %c0_35 = arith.constant 0 : index
      %c0_36 = arith.constant 0 : index
      %48 = vector.load %arg9[%c0_35, %c0_36] : memref<8x1xf32, #tpu.memory_space<vmem>>, vector<8x1xf32>
      %c0_37 = arith.constant 0 : index
      %c0_38 = arith.constant 0 : index
      %49 = vector.load %arg10[%c0_37, %c0_38] : memref<8x1xf32, #tpu.memory_space<vmem>>, vector<8x1xf32>
      %50 = arith.divf %48, %49 : vector<8x1xf32>
      %51 = math.log %47 : vector<8x1xf32>
      %52 = arith.addf %46, %51 : vector<8x1xf32>
      %53 = arith.subf %50, %52 : vector<8x1xf32>
      %cst_39 = arith.constant -1.42857146 : f32
      %54 = vector.broadcast %cst_39 : f32 to vector<8x1xf32>
      %55 = arith.mulf %54, %53 : vector<8x1xf32>
      %56 = vector.shape_cast %55 : vector<8x1xf32> to vector<8x1xf32>
      %57 = vector.broadcast %56 : vector<8x1xf32> to vector<8x128xf32>
      %c0_40 = arith.constant 0 : index
      %c0_41 = arith.constant 0 : index
      %58 = vector.load %arg6[%c0_40, %c0_41] : memref<8x128xf32, #tpu.memory_space<vmem>>, vector<8x128xf32>
      tpu.vector_store %arg6[%c0_40, %c0_41], %57 {strides = array<i32>} : memref<8x128xf32, #tpu.memory_space<vmem>>, vector<8x128xf32>,
    } else {
    }
    return
  }
  func.func @transform_0(%arg0: i32, %arg1: i32) -> (i32, i32) {
    %c0_i32 = arith.constant 0 : i32
    %c0_i32_0 = arith.constant 0 : i32
    return %arg0, %c0_i32 : i32, i32
  }
  func.func @transform_1(%arg0: i32, %arg1: i32) -> (i32, i32) {
    %c0_i32 = arith.constant 0 : i32
    %c0_i32_0 = arith.constant 0 : i32
    return %c0_i32, %arg1 : i32, i32
  }
  func.func @transform_2(%arg0: i32, %arg1: i32) -> (i32, i32) {
    %c0_i32 = arith.constant 0 : i32
    %c0_i32_0 = arith.constant 0 : i32
    return %arg0, %c0_i32 : i32, i32
  }
  func.func @transform_3(%arg0: i32, %arg1: i32) -> (i32, i32) {
    %c0_i32 = arith.constant 0 : i32
    %c0_i32_0 = arith.constant 0 : i32
    return %arg1, %c0_i32 : i32, i32
  }
  func.func @transform_4(%arg0: i32, %arg1: i32) -> (i32, i32) {
    %c0_i32 = arith.constant 0 : i32
    %c0_i32_0 = arith.constant 0 : i32
    return %arg0, %c0_i32 : i32, i32
  }
}

</mosaic_0001>

<llo_original>
// kernel: tpu_custom_call.1
$region0: #{tpu_custom_call.1}
  #allocation0 [shape = 'u32[]', space=smem, size = 0x4, offset = 0x4, fixed_abs, tag = 'smem constant byte address 0x4 - core index']
  #allocation1 [shape = 'u32[144,128]{1,0:T(1,128)}', space=vmem, size = 0x12000, scoped, tag = 'internal scratch']
  #allocation2 [shape = 'f32[8,1]{1,0:T(8,128)}', space=vmem, size = 0x1000, scoped, tag = 'scratch operand']
  #allocation3 [shape = 'f32[8,1]{1,0:T(8,128)}', space=vmem, size = 0x1000, scoped, tag = 'scratch operand']
  #allocation4 [shape = 'f32[8,1]{1,0:T(8,128)}', space=vmem, size = 0x1000, scoped, tag = 'scratch operand']
  #allocation5 [shape = 'f32[8,1]{1,0:T(8,128)}', space=vmem, size = 0x1000, scoped, tag = 'scratch operand']
  %s0 = inlined_call_operand.vmem [shape: s32[8,1], index: 0, kind: input, shape index: {}]
  %s1 = inlined_call_operand.vmem [shape: s32[1,8], index: 1, kind: input, shape index: {}]
  %s2 = inlined_call_operand.vmem [shape: bf16[8,32], index: 2, kind: input, shape index: {}]
  %s3 = inlined_call_operand.vmem [shape: bf16[8,32], index: 3, kind: input, shape index: {}]
  %s4 = inlined_call_operand.hbm [shape: f32[8,128], index: 4, kind: output, shape index: {}]
  %s5 = sld [smem:[#allocation0]]
  $region38: #{tpu_custom_call.1} parent=0
    _
  %s7 = ssub.s32 1, %s5
  %s8 = scalar_select 0, %s7, %s5
  $region1: #{tpu_custom_call.1} parent=0
    #allocation6 [shape = 'u8[4096]{0}', space=vmem, size = 0x1000, scoped, tag = 'output window, operand 0, single buffered']
    #allocation7 [shape = 's32[1]{0}', space=sflag, size = 0x4, scoped, tag = 'scoped memory for tpu_custom_call.1']
    %9 = vsyncpa [#allocation7], 0
    // Predicated region
    $region2: #{tpu_custom_call.1} parent=1 // pred_check
      _
    $region3: #{tpu_custom_call.1} parent=1 // pred_check_branch
      %11 = sbr.rel (0) target = $region5
    $region4: #{tpu_custom_call.1} parent=1 // pred_region
      _
    $region5: #{tpu_custom_call.1} parent=1 // pred_fallthru
      _
    // Predicated region
    $region6: #{tpu_custom_call.1} parent=1 // pred_check
      _
    $region7: #{tpu_custom_call.1} parent=1 // pred_check_branch
      %13 = sbr.rel (0) target = $region9
    $region8: #{tpu_custom_call.1} parent=1 // pred_region
      _
    $region9: #{tpu_custom_call.1} parent=1 // pred_fallthru
      _
    // Predicated region
    $region10: #{tpu_custom_call.1} parent=1 // pred_check
      _
    $region11: #{tpu_custom_call.1} parent=1 // pred_check_branch
      %15 = sbr.rel (0) target = $region13
    $region12: #{tpu_custom_call.1} parent=1 // pred_region
      _
    $region13: #{tpu_custom_call.1} parent=1 // pred_fallthru
      _
    // Predicated region
    $region14: #{tpu_custom_call.1} parent=1 // pred_check
      _
    $region15: #{tpu_custom_call.1} parent=1 // pred_check_branch
      %17 = sbr.rel (0) target = $region17
    $region16: #{tpu_custom_call.1} parent=1 // pred_region
      _
    $region17: #{tpu_custom_call.1} parent=1 // pred_fallthru
      _
    %p19 = scmp.eq.s32.totalorder 0, 0
    // Predicated region
    $region18: #{tpu_custom_call.1} parent=1 // pred_check
      %p20 = pneg %p19
    $region19: #{tpu_custom_call.1} parent=1 // pred_check_branch
      %22 = sbr.rel (%p20) target = $region21
    $region20: #{tpu_custom_call.1} parent=1 // pred_region
      %vm23 = vcmask 7168
      %24 = vst.msk [vmem:[#allocation2] sm:$0xff] %vm23, -inf
      %25 = vst.msk [vmem:[#allocation3] sm:$0xff] %vm23, 0.0
      %26 = vst.msk [vmem:[#allocation4] sm:$0xff] %vm23, 0.0
      %27 = vst.msk [vmem:[#allocation5] sm:$0xff] %vm23, 0.0
    $region21: #{tpu_custom_call.1} parent=1 // pred_fallthru
      _
    %v28 = vld [vmem:[%s2] sm:$0xf]
    %v29 = vld [vmem:[%s3] sm:$0xf]
    %vm30 = vcmask 261120
    %v32 = vsel %vm30, %v28, 0
    %v35 = vsel %vm30, %v29, 0
    %37 = vmatprep.subr.bf16.mxu0 0
    %38 = vmatpush1.bf16.xpose.msra.mxu0 %v35
    %39 = vmatprep.subr.bf16.mxu0 0
    %40 = vmatpush1.bf16.xpose.msra.mxu0 0
    %41 = vmatprep.subr.bf16.mxu0 0
    %42 = vmatpush1.bf16.xpose.msra.mxu0 0
    %43 = vmatprep.subr.bf16.mxu0 0
    %44 = vmatpush1.bf16.xpose.msra.mxu0 0
    %45 = vmatprep.subr.bf16.mxu0 0
    %46 = vmatpush1.bf16.xpose.msra.mxu0 0
    %47 = vmatprep.subr.bf16.mxu0 0
    %48 = vmatpush1.bf16.xpose.msra.mxu0 0
    %49 = vmatprep.subr.bf16.mxu0 0
    %50 = vmatpush1.bf16.xpose.msra.mxu0 0
    %51 = vmatprep.subr.bf16.mxu0 0
    %52 = vmatpush1.bf16.xpose.msra.mxu0 0
    %53 = vmatprep.subr.bf16.mxu0 0
    %54 = vmatpush1.bf16.xpose.msra.mxu0 0
    %55 = vmatprep.subr.bf16.mxu0 0
    %56 = vmatpush1.bf16.xpose.msra.mxu0 0
    %57 = vmatprep.subr.bf16.mxu0 0
    %58 = vmatpush1.bf16.xpose.msra.mxu0 0
    %59 = vmatprep.subr.bf16.mxu0 0
    %60 = vmatpush1.bf16.xpose.msra.mxu0 0
    %61 = vmatprep.subr.bf16.mxu0 0
    %62 = vmatpush1.bf16.xpose.msra.mxu0 0
    %63 = vmatprep.subr.bf16.mxu0 0
    %64 = vmatpush1.bf16.xpose.msra.mxu0 0
    %65 = vmatprep.subr.bf16.mxu0 0
    %66 = vmatpush1.bf16.xpose.msra.mxu0 0
    %67 = vmatprep.subr.bf16.mxu0 0
    %68 = vmatpush1.bf16.xpose.msra.mxu0 0
    %69 = vmatprep.mubr.bf16.mxu0 0
    %70 = vmatmul.mubr.bf16.gmra.mrb[0].mxu0 %v32
    %v71 = vpop.f32.mrb[0].mxu0
    %v72 = vadd.f32 0.0, %v71
    %v73 = vpop.f32.mrb[0].mxu0
    %v74 = vpop.f32.mrb[0].mxu0
    %v75 = vpop.f32.mrb[0].mxu0
    %76 = vdwg.mxu0
    %v77 = vld [vmem:[%s0] sm:$0xff]
    %v78 = vld [vmem:[%s1] sm:$0x1]
    %79 = vset.pattern.permute.xlu0 0
    %80 = vperm.xlu0 %79, %v77
    %v81 = vpop.permute.xlu0 %80
    %v82 = vlaneseq
    %v83 = vshrl.u32 %v82, 7
    %v84 = vsub.s32 0, %v83
    %v85 = vrot.slane %v78, %v84
    %vm86 = vcmp.eq.s32.totalorder %v81, %v85
    %v87 = vsel %vm86, 1, 0
    %v88 = vcvt.s32.f32 %v87
    %v89 = vld [vmem:[#allocation2] sm:$0xff]
    %vm90 = vcmask 64512
    %v91 = vsel %vm90, %v72, -inf
    %92 = vmax.xlane.f32.xlu0 %v91
    %v93 = vpop.xlane.xlu0 %92
    %v94 = vmax.f32 %v89, %v93
    %v95 = vsub.f32 %v89, %v94
    %v96 = vmul.f32 %v95, 1.442695
    %v97 = vpow.pop %v96
    %v98 = vld [vmem:[#allocation3] sm:$0xff]
    %v99 = vmul.f32 %v97, %v98
    %101 = vset.pattern.permute.xlu0 0
    %102 = vperm.xlu0 %101, %v94
    %v103 = vpop.permute.xlu0 %102
    %v105 = vsub.f32 %v72, %v103
    %v106 = vmul.f32 %v105, 1.442695
    %v107 = vpow.pop %v106
    %v108 = vsel %vm90, %v107, 0.0
    %109 = vadd.xlane.f32.xlu0 %v108
    %v110 = vpop.xlane.xlu0 %109
    %v111 = vadd.f32 %v99, %v110
    %vm112 = vcmask 7168
    %113 = vst.msk [vmem:[#allocation3] sm:$0xff] %vm112, %v111
    %114 = vst.msk [vmem:[#allocation2] sm:$0xff] %vm112, %v94
    %v115 = vld [vmem:[#allocation4] sm:$0xff]
    %v116 = vmul.f32 %v88, %v72
    %v117 = vsel %vm90, %v116, 0.0
    %118 = vadd.xlane.f32.xlu0 %v117
    %v119 = vpop.xlane.xlu0 %118
    %v120 = vadd.f32 %v115, %v119
    %121 = vst.msk [vmem:[#allocation4] sm:$0xff] %vm112, %v120
    %v122 = vld [vmem:[#allocation5] sm:$0xff]
    %v123 = vsel %vm90, %v88, 0.0
    %124 = vadd.xlane.f32.xlu0 %v123
    %v125 = vpop.xlane.xlu0 %124
    %v126 = vadd.f32 %v122, %v125
    %127 = vst.msk [vmem:[#allocation5] sm:$0xff] %vm112, %v126
    %p128 = scmp.eq.s32.totalorder 0, 0
    // Predicated region
    $region22: #{tpu_custom_call.1} parent=1 // pred_check
      %p129 = pneg %p128
    $region23: #{tpu_custom_call.1} parent=1 // pred_check_branch
      %131 = sbr.rel (%p129) target = $region25
    $region24: #{tpu_custom_call.1} parent=1 // pred_region
      %v132 = vlaneseq
      %v133 = vshrl.u32 %v132, 7
      %v134 = vlaneseq
      %v135 = vand.u32 %v134, 127
      %vm136 = vcmp.eq.s32.totalorder %v133, %v135
      %v137 = vsel %vm136, %v72, 0.0
      %v138 = vsel %vm90, %v137, 0.0
      %139 = vadd.xlane.f32.xlu0 %v138
      %v140 = vpop.xlane.xlu0 %139
      %v141 = vld [vmem:[#allocation3] sm:$0xff]
      %v142 = vsub.f32 %v140, %v94
      %v143 = vmul.f32 %v142, 1.442695
      %v144 = vpow.pop %v143
      %v145 = vsub.f32 %v141, %v144
      %146 = vst.msk [vmem:[#allocation3] sm:$0xff] %vm112, %v145
      %v147 = vld [vmem:[#allocation4] sm:$0xff]
      %v148 = vsub.f32 %v147, %v140
      %149 = vst.msk [vmem:[#allocation4] sm:$0xff] %vm112, %v148
      %v150 = vld [vmem:[#allocation5] sm:$0xff]
      %v151 = vsub.f32 %v150, 1.0
      %152 = vst.msk [vmem:[#allocation5] sm:$0xff] %vm112, %v151
    $region25: #{tpu_custom_call.1} parent=1 // pred_fallthru
      _
    // Predicated region
    $region26: #{tpu_custom_call.1} parent=1 // pred_check
      %p153 = pneg %p19
    $region27: #{tpu_custom_call.1} parent=1 // pred_check_branch
      %155 = sbr.rel (%p153) target = $region29
    $region28: #{tpu_custom_call.1} parent=1 // pred_region
      %v156 = vld [vmem:[#allocation2] sm:$0xff]
      %v157 = vld [vmem:[#allocation3] sm:$0xff]
      %v158 = vld [vmem:[#allocation4] sm:$0xff]
      %v159 = vld [vmem:[#allocation5] sm:$0xff]
      %v160 = vrcp.pop %v159
      %v161 = vmul.f32 %v158, %v160
      %v162 = vlog2.pop %v157
      %v163 = vmul.f32 %v162, 0.6931472
      %v164 = vadd.f32 %v156, %v163
      %v165 = vsub.f32 %v161, %v164
      %v166 = vmul.f32 %v165, -1.4285715
      %168 = vset.pattern.permute.xlu0 0
      %169 = vperm.xlu0 %168, %v166
      %v170 = vpop.permute.xlu0 %169
      %172 = vst [vmem:[#allocation6] sm:$0xff] %v170
    $region29: #{tpu_custom_call.1} parent=1 // pred_fallthru
      _
    // Predicated region
    $region30: #{tpu_custom_call.1} parent=1 // pred_check
      _
    $region31: #{tpu_custom_call.1} parent=1 // pred_check_branch
      %174 = sbr.rel (0) target = $region33
    $region32: #{tpu_custom_call.1} parent=1 // pred_region
      %s176 = ssub.s32 128, 128
      %177 = vsyncadd [#allocation7], %s176
      %s179 = sshll.u32 [#allocation6], 4
      %s180 = int_to_ptr.vmem [resolvable:$true] %s179
      %182 = dma.vmem_to_hbm [thread:$0]  %s180, 128, %s4, [#allocation7]
    $region33: #{tpu_custom_call.1} parent=1 // pred_fallthru
      _
    // Predicated region
    $region34: #{tpu_custom_call.1} parent=1 // pred_check
      _
    $region35: #{tpu_custom_call.1} parent=1 // pred_check_branch
      %184 = sbr.rel (0) target = $region37
    $region36: #{tpu_custom_call.1} parent=1 // pred_region
      %185 = dma.done [#allocation7], 128
    $region37: #{tpu_custom_call.1} parent=1 // pred_fallthru
      _
    %186 = vsyncpa [#allocation7], 1

</llo_original>
